<compile_context>
chip_gen: v7x
topology: tpu7x:2x2x1
jax: 0.10.0
libtpu: 0.0.40
codegen_flags: <defaults>
</compile_context>

<pallas_src>
import jax
import jax.numpy as jnp
from jax import lax
from jax.experimental import pallas as pl
from jax.experimental.pallas import tpu as pltpu

INPUT_SIZE = 28
HIDDEN = 64
NUM_CLASSES = 10
OUT_PAD = 128            # lane-dense output width (>= NUM_CLASSES)


def lstm_kernel(x_ref, wih_ref, whh_ref, b_ref, wout_ref, bout_ref,
                out_ref, proj_scr):
    """Full sequence for one batch tile per grid point.

    x_ref:    (1, T*Bt, I)   f32, time-major rows t*Bt + b for this batch tile
    wih_ref:  (I, 4H)        bf16, W_ih^T with g-columns pre-scaled by 2
    whh_ref:  (2H, 4H)       bf16, rows [0:H] = 0, rows [H:2H] = W_hh^T (g cols x2)
    b_ref:    (1, 4H)        f32, (b_ih + b_hh) with g entries pre-scaled by 2
    wout_ref: (2H, OUT_PAD)  f32, rows [H:2H] = W_out^T (zero elsewhere)
    bout_ref: (1, OUT_PAD)   f32
    out_ref:  (Bt, OUT_PAD)  f32
    proj_scr: (T*Bt, 4H)     f32 VMEM scratch for the hoisted input projection
    """
    TB = proj_scr.shape[0]
    Bt = out_ref.shape[0]
    T = TB // Bt
    H = HIDDEN

    # ---- hoisted, non-recurrent input projection: one bf16 MXU call --------
    xb = x_ref[0].astype(jnp.bfloat16)                       # (T*Bt, I)
    proj_scr[...] = (jnp.dot(xb, wih_ref[...],
                             preferred_element_type=jnp.float32)
                     + b_ref[...])

    whh = whh_ref[...]                                        # (2H, 4H) bf16, resident

    # Hoisted lane-mask constants (left 64 lanes of each 128-lane half).
    lane = lax.broadcasted_iota(jnp.int32, (Bt, 2 * H), 1)
    left = lane < H
    q_scale = jnp.where(left, 2.0, 1.0).astype(jnp.float32)   # fix pre-scaled g
    q_shift = jnp.where(left, -1.0, 0.0).astype(jnp.float32)

    # ---- sequential recurrence: only h @ W_hh^T stays on the serial path ---
    def step(t, carry):
        # h_carry = [garbage | h] (Bt, 2H), c_dup = [c | c] (Bt, 2H), both f32
        h_carry, c_dup = carry
        row = pl.multiple_of(t * Bt, 8)
        gates = (proj_scr[pl.ds(row, Bt), :]
                 + jnp.dot(h_carry.astype(jnp.bfloat16), whh,
                           preferred_element_type=jnp.float32))   # (Bt, 4H)

        # single EUP pass; tanh(g) recovered as 2*sigmoid(2g) - 1
        sig = jax.nn.sigmoid(gates)
        p = sig[:, :2 * H]                                     # [i | f] (vreg-aligned)
        q = sig[:, 2 * H:] * q_scale + q_shift                 # [g | o]

        t1 = p * q                                             # [i*g | f*o]
        t2 = p * c_dup                                         # [i*c | f*c]
        s = t1 + pltpu.roll(t2, H, axis=1)                     # [c_new | *]
        c_new = jnp.where(left, s, pltpu.roll(s, H, axis=1))   # [c_new | c_new]
        h_new = q * jnp.tanh(c_new)                            # [* | h_new]
        return h_new, c_new

    z = jnp.zeros((Bt, 2 * H), jnp.float32)
    h_T, _ = lax.fori_loop(0, T, step, (z, z), unroll=min(T, 8))

    # ---- final Linear(64 -> 10): zero rows of wout kill the left-half junk --
    out_ref[...] = (jnp.dot(h_T, wout_ref[...],
                            preferred_element_type=jnp.float32)
                    + bout_ref[...]).astype(out_ref.dtype)


def rnn_forward(x, params):
    """x: (B, T, INPUT_SIZE) float32 (batch_first, like the PyTorch module)."""
    B, T, I = x.shape
    assert I == INPUT_SIZE
    H = HIDDEN

    # Batch padding + tile choice (tile == padded batch for small B).
    if B <= 64:
        Bt = ((B + 7) // 8) * 8
        Bp = Bt
    else:
        Bt = 64
        Bp = ((B + Bt - 1) // Bt) * Bt
    G = Bp // Bt

    x_tm = jnp.transpose(x, (1, 0, 2))                         # (T, B, I)
    if Bp != B:
        x_tm = jnp.pad(x_tm, ((0, 0), (0, Bp - B), (0, 0)))
    # (T, Bp, I) -> (G, T*Bt, I): tile g holds rows t*Bt + b for batch g*Bt + b
    x_tiled = (x_tm.reshape(T, G, Bt, I)
                   .transpose(1, 0, 2, 3)
                   .reshape(G, T * Bt, I)).astype(jnp.float32)

    # PyTorch gate order is [i, f, g, o]; pre-scale the g block by 2 so the
    # kernel only needs one sigmoid pass (tanh(x) = 2*sigmoid(2x) - 1).
    gate_scale = jnp.concatenate([
        jnp.ones((2 * H,), jnp.float32),
        jnp.full((H,), 2.0, jnp.float32),
        jnp.ones((H,), jnp.float32)])

    wih_t = (params["w_ih"].T * gate_scale[None, :]).astype(jnp.bfloat16)    # (I, 4H)
    whh_t = params["w_hh"].T * gate_scale[None, :]                            # (H, 4H)
    whh_ext = jnp.concatenate(
        [jnp.zeros_like(whh_t), whh_t], axis=0).astype(jnp.bfloat16)          # (2H, 4H)
    bias = ((params["b_ih"] + params["b_hh"]) * gate_scale).reshape(1, 4 * H)

    wout_ext = jnp.zeros((2 * H, OUT_PAD), jnp.float32)
    wout_ext = wout_ext.at[H:, :NUM_CLASSES].set(params["w_out"].T)
    bout = jnp.zeros((1, OUT_PAD), jnp.float32)
    bout = bout.at[:, :NUM_CLASSES].set(params["b_out"])

    fixed = lambda b: (0, 0)
    grid_spec = pltpu.PrefetchScalarGridSpec(
        num_scalar_prefetch=0,
        grid=(G,),                                             # parallel batch tiles
        in_specs=[
            pl.BlockSpec((1, T * Bt, I), lambda b: (b, 0, 0)),  # x tile
            pl.BlockSpec((I, 4 * H), fixed),                    # W_ih^T (bf16)
            pl.BlockSpec((2 * H, 4 * H), fixed),                # W_hh^T ext (bf16)
            pl.BlockSpec((1, 4 * H), fixed),                    # fused bias
            pl.BlockSpec((2 * H, OUT_PAD), fixed),              # W_out^T ext
            pl.BlockSpec((1, OUT_PAD), fixed),                  # b_out
        ],
        out_specs=pl.BlockSpec((Bt, OUT_PAD), lambda b: (b, 0)),
        scratch_shapes=[
            pltpu.VMEM((T * Bt, 4 * H), jnp.float32),           # hoisted x projection
        ],
    )

    out = pl.pallas_call(
        lstm_kernel,
        out_shape=jax.ShapeDtypeStruct((Bp, OUT_PAD), jnp.float32),
        grid_spec=grid_spec,
        compiler_params=pltpu.CompilerParams(
            dimension_semantics=("parallel",)),
    )(x_tiled, wih_t, whh_ext, bias, wout_ext, bout)

    return out[:B, :NUM_CLASSES]


def make_params(key):
    """Deterministic init, same shapes as the PyTorch module (uniform +-1/sqrt(H))."""
    ks = jax.random.split(key, 6)
    bound = 1.0 / jnp.sqrt(jnp.float32(HIDDEN))
    u = lambda k, shape: jax.random.uniform(k, shape, jnp.float32, -bound, bound)
    return {
        "w_ih": u(ks[0], (4 * HIDDEN, INPUT_SIZE)),
        "w_hh": u(ks[1], (4 * HIDDEN, HIDDEN)),
        "b_ih": u(ks[2], (4 * HIDDEN,)),
        "b_hh": u(ks[3], (4 * HIDDEN,)),
        "w_out": u(ks[4], (NUM_CLASSES, HIDDEN)),
        "b_out": u(ks[5], (NUM_CLASSES,)),
    }


def rnn_reference(x, params):
    """Pure-JAX f32 reference (PyTorch LSTM semantics) for a correctness check."""
    B, T, _ = x.shape
    wih, whh = params["w_ih"], params["w_hh"]
    b = params["b_ih"] + params["b_hh"]

    def step(carry, x_t):
        h, c = carry
        gates = x_t @ wih.T + h @ whh.T + b
        i_g = jax.nn.sigmoid(gates[:, 0 * HIDDEN:1 * HIDDEN])
        f_g = jax.nn.sigmoid(gates[:, 1 * HIDDEN:2 * HIDDEN])
        g_g = jnp.tanh(gates[:, 2 * HIDDEN:3 * HIDDEN])
        o_g = jax.nn.sigmoid(gates[:, 3 * HIDDEN:4 * HIDDEN])
        c = f_g * c + i_g * g_g
        h = o_g * jnp.tanh(c)
        return (h, c), None

    h0 = jnp.zeros((B, HIDDEN), jnp.float32)
    c0 = jnp.zeros((B, HIDDEN), jnp.float32)
    (h_T, _), _ = lax.scan(step, (h0, c0), jnp.transpose(x, (1, 0, 2)))
    return h_T @ params["w_out"].T + params["b_out"]


if __name__ == "__main__":
    key = jax.random.PRNGKey(0)
    k_x, k_p = jax.random.split(key)

    B, T = 2, 8
    x = jax.random.normal(k_x, (B, T, INPUT_SIZE), jnp.float32)
    params = make_params(k_p)

    out = rnn_forward(x, params)
    out = jax.block_until_ready(out)

    ref = rnn_reference(x, params)
    assert out.shape == (B, NUM_CLASSES)
    # bf16 MXU operands -> looser tolerance than a pure-f32 run.
    assert jnp.allclose(out, ref, atol=2e-2, rtol=2e-2), (out, ref)

    print("KERNEL_OK")
</pallas_src>

<mosaic_0001>
module attributes {stable_mosaic.version = 11 : i64} {
  func.func @lstm_kernel(%arg0: i32, %arg1: memref<1x64x28xf32, #tpu.memory_space<vmem>>, %arg2: memref<28x256xbf16, #tpu.memory_space<vmem>>, %arg3: memref<128x256xbf16, #tpu.memory_space<vmem>>, %arg4: memref<1x256xf32, #tpu.memory_space<vmem>>, %arg5: memref<128x128xf32, #tpu.memory_space<vmem>>, %arg6: memref<1x128xf32, #tpu.memory_space<vmem>>, %arg7: memref<8x128xf32, #tpu.memory_space<vmem>>, %arg8: memref<64x256xf32, #tpu.memory_space<vmem>>) attributes {dimension_semantics = [#tpu.dimension_semantics<parallel>], iteration_bounds = array<i64: 1>, scalar_prefetch = 0 : i64, scratch_operands = 1 : i64, tpu.core_type = #tpu.core_type<tc>, window_params = [{transform_indices = @transform_0, window_bounds = array<i64: 1, 64, 28>}, {pipeline_mode = #tpu.pipeline_mode<synchronous>, transform_indices = @transform_1, window_bounds = array<i64: 28, 256>}, {pipeline_mode = #tpu.pipeline_mode<synchronous>, transform_indices = @transform_2, window_bounds = array<i64: 128, 256>}, {pipeline_mode = #tpu.pipeline_mode<synchronous>, transform_indices = @transform_3, window_bounds = array<i64: 1, 256>}, {pipeline_mode = #tpu.pipeline_mode<synchronous>, transform_indices = @transform_4, window_bounds = array<i64: 128, 128>}, {pipeline_mode = #tpu.pipeline_mode<synchronous>, transform_indices = @transform_5, window_bounds = array<i64: 1, 128>}, {transform_indices = @transform_6, window_bounds = array<i64: 8, 128>}]} {
    %c0 = arith.constant 0 : index
    %c0_0 = arith.constant 0 : index
    %c0_1 = arith.constant 0 : index
    %0 = vector.load %arg1[%c0, %c0_0, %c0_1] : memref<1x64x28xf32, #tpu.memory_space<vmem>>, vector<1x64x28xf32>
    %1 = vector.shape_cast %0 : vector<1x64x28xf32> to vector<64x28xf32>
    %2 = arith.truncf %1 : vector<64x28xf32> to vector<64x28xbf16>
    %c0_2 = arith.constant 0 : index
    %c0_3 = arith.constant 0 : index
    %3 = vector.load %arg2[%c0_2, %c0_3] : memref<28x256xbf16, #tpu.memory_space<vmem>>, vector<28x256xbf16>
    %cst = arith.constant dense<0.000000e+00> : vector<64x256xf32>
    %4 = tpu.matmul %2, %3, %cst {dimension_numbers = #tpu.dot_dimension_numbers<[1], [0], [0], [1], [0, 0, 1, 1], [], []>} : vector<64x28xbf16>, vector<28x256xbf16>, vector<64x256xf32> -> vector<64x256xf32>
    %c0_4 = arith.constant 0 : index
    %c0_5 = arith.constant 0 : index
    %5 = vector.load %arg4[%c0_4, %c0_5] : memref<1x256xf32, #tpu.memory_space<vmem>>, vector<1x256xf32>
    %6 = vector.broadcast %5 : vector<1x256xf32> to vector<64x256xf32>
    %7 = arith.addf %4, %6 : vector<64x256xf32>
    %c0_6 = arith.constant 0 : index
    %c0_7 = arith.constant 0 : index
    %8 = vector.load %arg8[%c0_6, %c0_7] : memref<64x256xf32, #tpu.memory_space<vmem>>, vector<64x256xf32>
    tpu.vector_store %arg8[%c0_6, %c0_7], %7 {strides = array<i32>} : memref<64x256xf32, #tpu.memory_space<vmem>>, vector<64x256xf32>,
    %c0_8 = arith.constant 0 : index
    %c0_9 = arith.constant 0 : index
    %9 = vector.load %arg3[%c0_8, %c0_9] : memref<128x256xbf16, #tpu.memory_space<vmem>>, vector<128x256xbf16>
    %10 = tpu.iota {dimensions = array<i32: 1>} : vector<8x128xi32>
    %c64_i32 = arith.constant 64 : i32
    %11 = vector.broadcast %c64_i32 : i32 to vector<8x128xi32>
    %12 = arith.cmpi slt, %10, %11 : vector<8x128xi32>
    %cst_10 = arith.constant 2.000000e+00 : f32
    %cst_11 = arith.constant 1.000000e+00 : f32
    %13 = vector.broadcast %cst_10 : f32 to vector<8x128xf32>
    %14 = vector.broadcast %cst_11 : f32 to vector<8x128xf32>
    %15 = arith.select %12, %13, %14 : vector<8x128xi1>, vector<8x128xf32>
    %cst_12 = arith.constant -1.000000e+00 : f32
    %cst_13 = arith.constant 0.000000e+00 : f32
    %16 = vector.broadcast %cst_12 : f32 to vector<8x128xf32>
    %17 = vector.broadcast %cst_13 : f32 to vector<8x128xf32>
    %18 = arith.select %12, %16, %17 : vector<8x128xi1>, vector<8x128xf32>
    %cst_14 = arith.constant 0.000000e+00 : f32
    %19 = vector.broadcast %cst_14 : f32 to vector<8x128xf32>
    %c0_i32 = arith.constant 0 : i32
    %c8_i32 = arith.constant 8 : i32
    %20 = arith.muli %c0_i32, %c8_i32 : i32
    %21 = tpu.assume_multiple %20, 8 : i32
    %22 = arith.index_cast %21 : i32 to index
    %c0_15 = arith.constant 0 : index
    %23 = vector.load %arg8[%22, %c0_15] : memref<64x256xf32, #tpu.memory_space<vmem>>, vector<8x256xf32>
    %24 = arith.truncf %19 : vector<8x128xf32> to vector<8x128xbf16>
    %cst_16 = arith.constant dense<0.000000e+00> : vector<8x256xf32>
    %25 = tpu.matmul %24, %9, %cst_16 {dimension_numbers = #tpu.dot_dimension_numbers<[1], [0], [0], [1], [0, 0, 1, 1], [], []>} : vector<8x128xbf16>, vector<128x256xbf16>, vector<8x256xf32> -> vector<8x256xf32>
    %26 = arith.addf %23, %25 : vector<8x256xf32>
    %27 = arith.negf %26 : vector<8x256xf32>
    %28 = math.exp %27 : vector<8x256xf32>
    %cst_17 = arith.constant 1.000000e+00 : f32
    %29 = vector.broadcast %cst_17 : f32 to vector<8x256xf32>
    %30 = arith.addf %29, %28 : vector<8x256xf32>
    %31 = arith.divf %29, %30 : vector<8x256xf32>
    %32 = vector.extract_strided_slice %31 {offsets = [0, 0], sizes = [8, 128], strides = [1, 1]} : vector<8x256xf32> to vector<8x128xf32>
    %33 = vector.extract_strided_slice %31 {offsets = [0, 128], sizes = [8, 128], strides = [1, 1]} : vector<8x256xf32> to vector<8x128xf32>
    %34 = arith.mulf %33, %15 : vector<8x128xf32>
    %35 = arith.addf %34, %18 : vector<8x128xf32>
    %36 = arith.mulf %32, %35 : vector<8x128xf32>
    %37 = arith.mulf %32, %19 : vector<8x128xf32>
    %c64_i32_18 = arith.constant 64 : i32
    %38 = tpu.dynamic_rotate %37 by %c64_i32_18 dim 1 : vector<8x128xf32>, i32 -> vector<8x128xf32>
    %39 = arith.addf %36, %38 : vector<8x128xf32>
    %c64_i32_19 = arith.constant 64 : i32
    %40 = tpu.dynamic_rotate %39 by %c64_i32_19 dim 1 : vector<8x128xf32>, i32 -> vector<8x128xf32>
    %41 = arith.select %12, %39, %40 : vector<8x128xi1>, vector<8x128xf32>
    %42 = math.tanh %41 : vector<8x128xf32>
    %43 = arith.mulf %35, %42 : vector<8x128xf32>
    %c1_i32 = arith.constant 1 : i32
    %c8_i32_20 = arith.constant 8 : i32
    %44 = arith.muli %c1_i32, %c8_i32_20 : i32
    %45 = tpu.assume_multiple %44, 8 : i32
    %46 = arith.index_cast %45 : i32 to index
    %c0_21 = arith.constant 0 : index
    %47 = vector.load %arg8[%46, %c0_21] : memref<64x256xf32, #tpu.memory_space<vmem>>, vector<8x256xf32>
    %48 = arith.truncf %43 : vector<8x128xf32> to vector<8x128xbf16>
    %cst_22 = arith.constant dense<0.000000e+00> : vector<8x256xf32>
    %49 = tpu.matmul %48, %9, %cst_22 {dimension_numbers = #tpu.dot_dimension_numbers<[1], [0], [0], [1], [0, 0, 1, 1], [], []>} : vector<8x128xbf16>, vector<128x256xbf16>, vector<8x256xf32> -> vector<8x256xf32>
    %50 = arith.addf %47, %49 : vector<8x256xf32>
    %51 = arith.negf %50 : vector<8x256xf32>
    %52 = math.exp %51 : vector<8x256xf32>
    %cst_23 = arith.constant 1.000000e+00 : f32
    %53 = vector.broadcast %cst_23 : f32 to vector<8x256xf32>
    %54 = arith.addf %53, %52 : vector<8x256xf32>
    %55 = arith.divf %53, %54 : vector<8x256xf32>
    %56 = vector.extract_strided_slice %55 {offsets = [0, 0], sizes = [8, 128], strides = [1, 1]} : vector<8x256xf32> to vector<8x128xf32>
    %57 = vector.extract_strided_slice %55 {offsets = [0, 128], sizes = [8, 128], strides = [1, 1]} : vector<8x256xf32> to vector<8x128xf32>
    %58 = arith.mulf %57, %15 : vector<8x128xf32>
    %59 = arith.addf %58, %18 : vector<8x128xf32>
    %60 = arith.mulf %56, %59 : vector<8x128xf32>
    %61 = arith.mulf %56, %41 : vector<8x128xf32>
    %c64_i32_24 = arith.constant 64 : i32
    %62 = tpu.dynamic_rotate %61 by %c64_i32_24 dim 1 : vector<8x128xf32>, i32 -> vector<8x128xf32>
    %63 = arith.addf %60, %62 : vector<8x128xf32>
    %c64_i32_25 = arith.constant 64 : i32
    %64 = tpu.dynamic_rotate %63 by %c64_i32_25 dim 1 : vector<8x128xf32>, i32 -> vector<8x128xf32>
    %65 = arith.select %12, %63, %64 : vector<8x128xi1>, vector<8x128xf32>
    %66 = math.tanh %65 : vector<8x128xf32>
    %67 = arith.mulf %59, %66 : vector<8x128xf32>
    %c2_i32 = arith.constant 2 : i32
    %c8_i32_26 = arith.constant 8 : i32
    %68 = arith.muli %c2_i32, %c8_i32_26 : i32
    %69 = tpu.assume_multiple %68, 8 : i32
    %70 = arith.index_cast %69 : i32 to index
    %c0_27 = arith.constant 0 : index
    %71 = vector.load %arg8[%70, %c0_27] : memref<64x256xf32, #tpu.memory_space<vmem>>, vector<8x256xf32>
    %72 = arith.truncf %67 : vector<8x128xf32> to vector<8x128xbf16>
    %cst_28 = arith.constant dense<0.000000e+00> : vector<8x256xf32>
    %73 = tpu.matmul %72, %9, %cst_28 {dimension_numbers = #tpu.dot_dimension_numbers<[1], [0], [0], [1], [0, 0, 1, 1], [], []>} : vector<8x128xbf16>, vector<128x256xbf16>, vector<8x256xf32> -> vector<8x256xf32>
    %74 = arith.addf %71, %73 : vector<8x256xf32>
    %75 = arith.negf %74 : vector<8x256xf32>
    %76 = math.exp %75 : vector<8x256xf32>
    %cst_29 = arith.constant 1.000000e+00 : f32
    %77 = vector.broadcast %cst_29 : f32 to vector<8x256xf32>
    %78 = arith.addf %77, %76 : vector<8x256xf32>
    %79 = arith.divf %77, %78 : vector<8x256xf32>
    %80 = vector.extract_strided_slice %79 {offsets = [0, 0], sizes = [8, 128], strides = [1, 1]} : vector<8x256xf32> to vector<8x128xf32>
    %81 = vector.extract_strided_slice %79 {offsets = [0, 128], sizes = [8, 128], strides = [1, 1]} : vector<8x256xf32> to vector<8x128xf32>
    %82 = arith.mulf %81, %15 : vector<8x128xf32>
    %83 = arith.addf %82, %18 : vector<8x128xf32>
    %84 = arith.mulf %80, %83 : vector<8x128xf32>
    %85 = arith.mulf %80, %65 : vector<8x128xf32>
    %c64_i32_30 = arith.constant 64 : i32
    %86 = tpu.dynamic_rotate %85 by %c64_i32_30 dim 1 : vector<8x128xf32>, i32 -> vector<8x128xf32>
    %87 = arith.addf %84, %86 : vector<8x128xf32>
    %c64_i32_31 = arith.constant 64 : i32
    %88 = tpu.dynamic_rotate %87 by %c64_i32_31 dim 1 : vector<8x128xf32>, i32 -> vector<8x128xf32>
    %89 = arith.select %12, %87, %88 : vector<8x128xi1>, vector<8x128xf32>
    %90 = math.tanh %89 : vector<8x128xf32>
    %91 = arith.mulf %83, %90 : vector<8x128xf32>
    %c3_i32 = arith.constant 3 : i32
    %c8_i32_32 = arith.constant 8 : i32
    %92 = arith.muli %c3_i32, %c8_i32_32 : i32
    %93 = tpu.assume_multiple %92, 8 : i32
    %94 = arith.index_cast %93 : i32 to index
    %c0_33 = arith.constant 0 : index
    %95 = vector.load %arg8[%94, %c0_33] : memref<64x256xf32, #tpu.memory_space<vmem>>, vector<8x256xf32>
    %96 = arith.truncf %91 : vector<8x128xf32> to vector<8x128xbf16>
    %cst_34 = arith.constant dense<0.000000e+00> : vector<8x256xf32>
    %97 = tpu.matmul %96, %9, %cst_34 {dimension_numbers = #tpu.dot_dimension_numbers<[1], [0], [0], [1], [0, 0, 1, 1], [], []>} : vector<8x128xbf16>, vector<128x256xbf16>, vector<8x256xf32> -> vector<8x256xf32>
    %98 = arith.addf %95, %97 : vector<8x256xf32>
    %99 = arith.negf %98 : vector<8x256xf32>
    %100 = math.exp %99 : vector<8x256xf32>
    %cst_35 = arith.constant 1.000000e+00 : f32
    %101 = vector.broadcast %cst_35 : f32 to vector<8x256xf32>
    %102 = arith.addf %101, %100 : vector<8x256xf32>
    %103 = arith.divf %101, %102 : vector<8x256xf32>
    %104 = vector.extract_strided_slice %103 {offsets = [0, 0], sizes = [8, 128], strides = [1, 1]} : vector<8x256xf32> to vector<8x128xf32>
    %105 = vector.extract_strided_slice %103 {offsets = [0, 128], sizes = [8, 128], strides = [1, 1]} : vector<8x256xf32> to vector<8x128xf32>
    %106 = arith.mulf %105, %15 : vector<8x128xf32>
    %107 = arith.addf %106, %18 : vector<8x128xf32>
    %108 = arith.mulf %104, %107 : vector<8x128xf32>
    %109 = arith.mulf %104, %89 : vector<8x128xf32>
    %c64_i32_36 = arith.constant 64 : i32
    %110 = tpu.dynamic_rotate %109 by %c64_i32_36 dim 1 : vector<8x128xf32>, i32 -> vector<8x128xf32>
    %111 = arith.addf %108, %110 : vector<8x128xf32>
    %c64_i32_37 = arith.constant 64 : i32
    %112 = tpu.dynamic_rotate %111 by %c64_i32_37 dim 1 : vector<8x128xf32>, i32 -> vector<8x128xf32>
    %113 = arith.select %12, %111, %112 : vector<8x128xi1>, vector<8x128xf32>
    %114 = math.tanh %113 : vector<8x128xf32>
    %115 = arith.mulf %107, %114 : vector<8x128xf32>
    %c4_i32 = arith.constant 4 : i32
    %c8_i32_38 = arith.constant 8 : i32
    %116 = arith.muli %c4_i32, %c8_i32_38 : i32
    %117 = tpu.assume_multiple %116, 8 : i32
    %118 = arith.index_cast %117 : i32 to index
    %c0_39 = arith.constant 0 : index
    %119 = vector.load %arg8[%118, %c0_39] : memref<64x256xf32, #tpu.memory_space<vmem>>, vector<8x256xf32>
    %120 = arith.truncf %115 : vector<8x128xf32> to vector<8x128xbf16>
    %cst_40 = arith.constant dense<0.000000e+00> : vector<8x256xf32>
    %121 = tpu.matmul %120, %9, %cst_40 {dimension_numbers = #tpu.dot_dimension_numbers<[1], [0], [0], [1], [0, 0, 1, 1], [], []>} : vector<8x128xbf16>, vector<128x256xbf16>, vector<8x256xf32> -> vector<8x256xf32>
    %122 = arith.addf %119, %121 : vector<8x256xf32>
    %123 = arith.negf %122 : vector<8x256xf32>
    %124 = math.exp %123 : vector<8x256xf32>
    %cst_41 = arith.constant 1.000000e+00 : f32
    %125 = vector.broadcast %cst_41 : f32 to vector<8x256xf32>
    %126 = arith.addf %125, %124 : vector<8x256xf32>
    %127 = arith.divf %125, %126 : vector<8x256xf32>
    %128 = vector.extract_strided_slice %127 {offsets = [0, 0], sizes = [8, 128], strides = [1, 1]} : vector<8x256xf32> to vector<8x128xf32>
    %129 = vector.extract_strided_slice %127 {offsets = [0, 128], sizes = [8, 128], strides = [1, 1]} : vector<8x256xf32> to vector<8x128xf32>
    %130 = arith.mulf %129, %15 : vector<8x128xf32>
    %131 = arith.addf %130, %18 : vector<8x128xf32>
    %132 = arith.mulf %128, %131 : vector<8x128xf32>
    %133 = arith.mulf %128, %113 : vector<8x128xf32>
    %c64_i32_42 = arith.constant 64 : i32
    %134 = tpu.dynamic_rotate %133 by %c64_i32_42 dim 1 : vector<8x128xf32>, i32 -> vector<8x128xf32>
    %135 = arith.addf %132, %134 : vector<8x128xf32>
    %c64_i32_43 = arith.constant 64 : i32
    %136 = tpu.dynamic_rotate %135 by %c64_i32_43 dim 1 : vector<8x128xf32>, i32 -> vector<8x128xf32>
    %137 = arith.select %12, %135, %136 : vector<8x128xi1>, vector<8x128xf32>
    %138 = math.tanh %137 : vector<8x128xf32>
    %139 = arith.mulf %131, %138 : vector<8x128xf32>
    %c5_i32 = arith.constant 5 : i32
    %c8_i32_44 = arith.constant 8 : i32
    %140 = arith.muli %c5_i32, %c8_i32_44 : i32
    %141 = tpu.assume_multiple %140, 8 : i32
    %142 = arith.index_cast %141 : i32 to index
    %c0_45 = arith.constant 0 : index
    %143 = vector.load %arg8[%142, %c0_45] : memref<64x256xf32, #tpu.memory_space<vmem>>, vector<8x256xf32>
    %144 = arith.truncf %139 : vector<8x128xf32> to vector<8x128xbf16>
    %cst_46 = arith.constant dense<0.000000e+00> : vector<8x256xf32>
    %145 = tpu.matmul %144, %9, %cst_46 {dimension_numbers = #tpu.dot_dimension_numbers<[1], [0], [0], [1], [0, 0, 1, 1], [], []>} : vector<8x128xbf16>, vector<128x256xbf16>, vector<8x256xf32> -> vector<8x256xf32>
    %146 = arith.addf %143, %145 : vector<8x256xf32>
    %147 = arith.negf %146 : vector<8x256xf32>
    %148 = math.exp %147 : vector<8x256xf32>
    %cst_47 = arith.constant 1.000000e+00 : f32
    %149 = vector.broadcast %cst_47 : f32 to vector<8x256xf32>
    %150 = arith.addf %149, %148 : vector<8x256xf32>
    %151 = arith.divf %149, %150 : vector<8x256xf32>
    %152 = vector.extract_strided_slice %151 {offsets = [0, 0], sizes = [8, 128], strides = [1, 1]} : vector<8x256xf32> to vector<8x128xf32>
    %153 = vector.extract_strided_slice %151 {offsets = [0, 128], sizes = [8, 128], strides = [1, 1]} : vector<8x256xf32> to vector<8x128xf32>
    %154 = arith.mulf %153, %15 : vector<8x128xf32>
    %155 = arith.addf %154, %18 : vector<8x128xf32>
    %156 = arith.mulf %152, %155 : vector<8x128xf32>
    %157 = arith.mulf %152, %137 : vector<8x128xf32>
    %c64_i32_48 = arith.constant 64 : i32
    %158 = tpu.dynamic_rotate %157 by %c64_i32_48 dim 1 : vector<8x128xf32>, i32 -> vector<8x128xf32>
    %159 = arith.addf %156, %158 : vector<8x128xf32>
    %c64_i32_49 = arith.constant 64 : i32
    %160 = tpu.dynamic_rotate %159 by %c64_i32_49 dim 1 : vector<8x128xf32>, i32 -> vector<8x128xf32>
    %161 = arith.select %12, %159, %160 : vector<8x128xi1>, vector<8x128xf32>
    %162 = math.tanh %161 : vector<8x128xf32>
    %163 = arith.mulf %155, %162 : vector<8x128xf32>
    %c6_i32 = arith.constant 6 : i32
    %c8_i32_50 = arith.constant 8 : i32
    %164 = arith.muli %c6_i32, %c8_i32_50 : i32
    %165 = tpu.assume_multiple %164, 8 : i32
    %166 = arith.index_cast %165 : i32 to index
    %c0_51 = arith.constant 0 : index
    %167 = vector.load %arg8[%166, %c0_51] : memref<64x256xf32, #tpu.memory_space<vmem>>, vector<8x256xf32>
    %168 = arith.truncf %163 : vector<8x128xf32> to vector<8x128xbf16>
    %cst_52 = arith.constant dense<0.000000e+00> : vector<8x256xf32>
    %169 = tpu.matmul %168, %9, %cst_52 {dimension_numbers = #tpu.dot_dimension_numbers<[1], [0], [0], [1], [0, 0, 1, 1], [], []>} : vector<8x128xbf16>, vector<128x256xbf16>, vector<8x256xf32> -> vector<8x256xf32>
    %170 = arith.addf %167, %169 : vector<8x256xf32>
    %171 = arith.negf %170 : vector<8x256xf32>
    %172 = math.exp %171 : vector<8x256xf32>
    %cst_53 = arith.constant 1.000000e+00 : f32
    %173 = vector.broadcast %cst_53 : f32 to vector<8x256xf32>
    %174 = arith.addf %173, %172 : vector<8x256xf32>
    %175 = arith.divf %173, %174 : vector<8x256xf32>
    %176 = vector.extract_strided_slice %175 {offsets = [0, 0], sizes = [8, 128], strides = [1, 1]} : vector<8x256xf32> to vector<8x128xf32>
    %177 = vector.extract_strided_slice %175 {offsets = [0, 128], sizes = [8, 128], strides = [1, 1]} : vector<8x256xf32> to vector<8x128xf32>
    %178 = arith.mulf %177, %15 : vector<8x128xf32>
    %179 = arith.addf %178, %18 : vector<8x128xf32>
    %180 = arith.mulf %176, %179 : vector<8x128xf32>
    %181 = arith.mulf %176, %161 : vector<8x128xf32>
    %c64_i32_54 = arith.constant 64 : i32
    %182 = tpu.dynamic_rotate %181 by %c64_i32_54 dim 1 : vector<8x128xf32>, i32 -> vector<8x128xf32>
    %183 = arith.addf %180, %182 : vector<8x128xf32>
    %c64_i32_55 = arith.constant 64 : i32
    %184 = tpu.dynamic_rotate %183 by %c64_i32_55 dim 1 : vector<8x128xf32>, i32 -> vector<8x128xf32>
    %185 = arith.select %12, %183, %184 : vector<8x128xi1>, vector<8x128xf32>
    %186 = math.tanh %185 : vector<8x128xf32>
    %187 = arith.mulf %179, %186 : vector<8x128xf32>
    %c7_i32 = arith.constant 7 : i32
    %c8_i32_56 = arith.constant 8 : i32
    %188 = arith.muli %c7_i32, %c8_i32_56 : i32
    %189 = tpu.assume_multiple %188, 8 : i32
    %190 = arith.index_cast %189 : i32 to index
    %c0_57 = arith.constant 0 : index
    %191 = vector.load %arg8[%190, %c0_57] : memref<64x256xf32, #tpu.memory_space<vmem>>, vector<8x256xf32>
    %192 = arith.truncf %187 : vector<8x128xf32> to vector<8x128xbf16>
    %cst_58 = arith.constant dense<0.000000e+00> : vector<8x256xf32>
    %193 = tpu.matmul %192, %9, %cst_58 {dimension_numbers = #tpu.dot_dimension_numbers<[1], [0], [0], [1], [0, 0, 1, 1], [], []>} : vector<8x128xbf16>, vector<128x256xbf16>, vector<8x256xf32> -> vector<8x256xf32>
    %194 = arith.addf %191, %193 : vector<8x256xf32>
    %195 = arith.negf %194 : vector<8x256xf32>
    %196 = math.exp %195 : vector<8x256xf32>
    %cst_59 = arith.constant 1.000000e+00 : f32
    %197 = vector.broadcast %cst_59 : f32 to vector<8x256xf32>
    %198 = arith.addf %197, %196 : vector<8x256xf32>
    %199 = arith.divf %197, %198 : vector<8x256xf32>
    %200 = vector.extract_strided_slice %199 {offsets = [0, 0], sizes = [8, 128], strides = [1, 1]} : vector<8x256xf32> to vector<8x128xf32>
    %201 = vector.extract_strided_slice %199 {offsets = [0, 128], sizes = [8, 128], strides = [1, 1]} : vector<8x256xf32> to vector<8x128xf32>
    %202 = arith.mulf %201, %15 : vector<8x128xf32>
    %203 = arith.addf %202, %18 : vector<8x128xf32>
    %204 = arith.mulf %200, %203 : vector<8x128xf32>
    %205 = arith.mulf %200, %185 : vector<8x128xf32>
    %c64_i32_60 = arith.constant 64 : i32
    %206 = tpu.dynamic_rotate %205 by %c64_i32_60 dim 1 : vector<8x128xf32>, i32 -> vector<8x128xf32>
    %207 = arith.addf %204, %206 : vector<8x128xf32>
    %c64_i32_61 = arith.constant 64 : i32
    %208 = tpu.dynamic_rotate %207 by %c64_i32_61 dim 1 : vector<8x128xf32>, i32 -> vector<8x128xf32>
    %209 = arith.select %12, %207, %208 : vector<8x128xi1>, vector<8x128xf32>
    %210 = math.tanh %209 : vector<8x128xf32>
    %211 = arith.mulf %203, %210 : vector<8x128xf32>
    %c8_i32_62 = arith.constant 8 : i32
    %c0_63 = arith.constant 0 : index
    %c0_64 = arith.constant 0 : index
    %212 = vector.load %arg5[%c0_63, %c0_64] : memref<128x128xf32, #tpu.memory_space<vmem>>, vector<128x128xf32>
    %cst_65 = arith.constant dense<0.000000e+00> : vector<8x128xf32>
    %213 = tpu.matmul %211, %212, %cst_65 {dimension_numbers = #tpu.dot_dimension_numbers<[1], [0], [0], [1], [0, 0, 1, 1], [], []>} : vector<8x128xf32>, vector<128x128xf32>, vector<8x128xf32> -> vector<8x128xf32>
    %c0_66 = arith.constant 0 : index
    %c0_67 = arith.constant 0 : index
    %214 = vector.load %arg6[%c0_66, %c0_67] : memref<1x128xf32, #tpu.memory_space<vmem>>, vector<1x128xf32>
    %215 = vector.broadcast %214 : vector<1x128xf32> to vector<8x128xf32>
    %216 = arith.addf %213, %215 : vector<8x128xf32>
    %c0_68 = arith.constant 0 : index
    %c0_69 = arith.constant 0 : index
    %217 = vector.load %arg7[%c0_68, %c0_69] : memref<8x128xf32, #tpu.memory_space<vmem>>, vector<8x128xf32>
    tpu.vector_store %arg7[%c0_68, %c0_69], %216 {strides = array<i32>} : memref<8x128xf32, #tpu.memory_space<vmem>>, vector<8x128xf32>,
    return
  }
  func.func @transform_0(%arg0: i32) -> (i32, i32, i32) {
    %c0_i32 = arith.constant 0 : i32
    %c0_i32_0 = arith.constant 0 : i32
    %c0_i32_1 = arith.constant 0 : i32
    return %arg0, %c0_i32, %c0_i32_0 : i32, i32, i32
  }
  func.func @transform_1(%arg0: i32) -> (i32, i32) {
    %c0_i32 = arith.constant 0 : i32
    %c0_i32_0 = arith.constant 0 : i32
    %c0_i32_1 = arith.constant 0 : i32
    return %c0_i32, %c0_i32_0 : i32, i32
  }
  func.func @transform_2(%arg0: i32) -> (i32, i32) {
    %c0_i32 = arith.constant 0 : i32
    %c0_i32_0 = arith.constant 0 : i32
    %c0_i32_1 = arith.constant 0 : i32
    return %c0_i32, %c0_i32_0 : i32, i32
  }
  func.func @transform_3(%arg0: i32) -> (i32, i32) {
    %c0_i32 = arith.constant 0 : i32
    %c0_i32_0 = arith.constant 0 : i32
    %c0_i32_1 = arith.constant 0 : i32
    return %c0_i32, %c0_i32_0 : i32, i32
  }
  func.func @transform_4(%arg0: i32) -> (i32, i32) {
    %c0_i32 = arith.constant 0 : i32
    %c0_i32_0 = arith.constant 0 : i32
    %c0_i32_1 = arith.constant 0 : i32
    return %c0_i32, %c0_i32_0 : i32, i32
  }
  func.func @transform_5(%arg0: i32) -> (i32, i32) {
    %c0_i32 = arith.constant 0 : i32
    %c0_i32_0 = arith.constant 0 : i32
    %c0_i32_1 = arith.constant 0 : i32
    return %c0_i32, %c0_i32_0 : i32, i32
  }
  func.func @transform_6(%arg0: i32) -> (i32, i32) {
    %c0_i32 = arith.constant 0 : i32
    %c0_i32_0 = arith.constant 0 : i32
    return %arg0, %c0_i32 : i32, i32
  }
}

</mosaic_0001>

<llo_original>
// kernel: tpu_custom_call.1
$region0: #{tpu_custom_call.1}
  #allocation0 [shape = 'u32[]', space=smem, size = 0x4, offset = 0x4, fixed_abs, tag = 'smem constant byte address 0x4 - core index']
  #allocation1 [shape = 'u32[144,128]{1,0:T(1,128)}', space=vmem, size = 0x12000, scoped, tag = 'internal scratch']
  #allocation2 [shape = 'f32[64,256]{1,0:T(8,128)}', space=vmem, size = 0x10000, scoped, tag = 'scratch operand']
  %s0 = inlined_call_operand.vmem [shape: f32[1,64,28], index: 0, kind: input, shape index: {}]
  %s1 = inlined_call_operand.vmem [shape: bf16[28,256], index: 1, kind: input, shape index: {}]
  %s2 = inlined_call_operand.hbm [shape: bf16[128,256], index: 2, kind: input, shape index: {}]
  %s3 = inlined_call_operand.vmem [shape: f32[1,256], index: 3, kind: input, shape index: {}]
  %s4 = inlined_call_operand.hbm [shape: f32[128,128], index: 4, kind: input, shape index: {}]
  %s5 = inlined_call_operand.vmem [shape: f32[1,128], index: 5, kind: input, shape index: {}]
  %s6 = inlined_call_operand.hbm [shape: f32[8,128], index: 6, kind: output, shape index: {}]
  %s7 = sld [smem:[#allocation0]]
  $region42: #{tpu_custom_call.1} parent=0
    _
  %s9 = ssub.s32 1, %s7
  %s10 = scalar_select 0, %s9, %s7
  $region1: #{tpu_custom_call.1} parent=0
    #allocation3 [shape = 'u8[65536]{0}', space=vmem, size = 0x10000, scoped, tag = 'input window, operand 2, single buffered']
    #allocation4 [shape = 's32[1]{0}', space=sflag, size = 0x4, scoped, tag = 'scoped memory for tpu_custom_call.1']
    #allocation5 [shape = 's32[1]{0}', space=sflag, size = 0x4, scoped, tag = 'scoped memory for tpu_custom_call.1']
    #allocation6 [shape = 'u8[65536]{0}', space=vmem, size = 0x10000, scoped, tag = 'input window, operand 4, single buffered']
    #allocation7 [shape = 's32[1]{0}', space=sflag, size = 0x4, scoped, tag = 'scoped memory for tpu_custom_call.1']
    #allocation8 [shape = 'u8[4096]{0}', space=vmem, size = 0x1000, scoped, tag = 'output window, operand 0, single buffered']
    %11 = vsyncpa [#allocation4], 0
    %12 = vsyncpa [#allocation7], 0
    %13 = vsyncpa [#allocation5], 0
    // Predicated region
    $region2: #{tpu_custom_call.1} parent=1 // pred_check
      _
    $region3: #{tpu_custom_call.1} parent=1 // pred_check_branch
      %15 = sbr.rel (0) target = $region5
    $region4: #{tpu_custom_call.1} parent=1 // pred_region
      _
    $region5: #{tpu_custom_call.1} parent=1 // pred_fallthru
      _
    // Predicated region
    $region6: #{tpu_custom_call.1} parent=1 // pred_check
      _
    $region7: #{tpu_custom_call.1} parent=1 // pred_check_branch
      %17 = sbr.rel (0) target = $region9
    $region8: #{tpu_custom_call.1} parent=1 // pred_region
      _
    $region9: #{tpu_custom_call.1} parent=1 // pred_fallthru
      _
    // Predicated region
    $region10: #{tpu_custom_call.1} parent=1 // pred_check
      _
    $region11: #{tpu_custom_call.1} parent=1 // pred_check_branch
      %19 = sbr.rel (0) target = $region13
    $region12: #{tpu_custom_call.1} parent=1 // pred_region
      %s21 = ssub.s32 2048, 2048
      %22 = vsyncadd [#allocation4], %s21
      %s23 = sshll.u32 [#allocation3], 4
      %s24 = int_to_ptr.vmem [resolvable:$true] %s23
      %29 = dma.hbm_to_vmem [thread:$0]  %s2, 2048, %s24, [#allocation4], 128, 128, 8
    $region13: #{tpu_custom_call.1} parent=1 // pred_fallthru
      _
    // Predicated region
    $region14: #{tpu_custom_call.1} parent=1 // pred_check
      _
    $region15: #{tpu_custom_call.1} parent=1 // pred_check_branch
      %31 = sbr.rel (0) target = $region17
    $region16: #{tpu_custom_call.1} parent=1 // pred_region
      _
    $region17: #{tpu_custom_call.1} parent=1 // pred_fallthru
      _
    // Predicated region
    $region18: #{tpu_custom_call.1} parent=1 // pred_check
      _
    $region19: #{tpu_custom_call.1} parent=1 // pred_check_branch
      %33 = sbr.rel (0) target = $region21
    $region20: #{tpu_custom_call.1} parent=1 // pred_region
      %s35 = ssub.s32 2048, 2048
      %36 = vsyncadd [#allocation7], %s35
      %s37 = sshll.u32 [#allocation6], 4
      %s38 = int_to_ptr.vmem [resolvable:$true] %s37
      %43 = dma.hbm_to_vmem [thread:$0]  %s4, 2048, %s38, [#allocation7], 128, 128, 8
    $region21: #{tpu_custom_call.1} parent=1 // pred_fallthru
      _
    // Predicated region
    $region22: #{tpu_custom_call.1} parent=1 // pred_check
      _
    $region23: #{tpu_custom_call.1} parent=1 // pred_check_branch
      %45 = sbr.rel (0) target = $region25
    $region24: #{tpu_custom_call.1} parent=1 // pred_region
      _
    $region25: #{tpu_custom_call.1} parent=1 // pred_fallthru
      _
    // Predicated region
    $region26: #{tpu_custom_call.1} parent=1 // pred_check
      _
    $region27: #{tpu_custom_call.1} parent=1 // pred_check_branch
      %47 = sbr.rel (0) target = $region29
    $region28: #{tpu_custom_call.1} parent=1 // pred_region
      %48 = dma.done [#allocation4], 2048
    $region29: #{tpu_custom_call.1} parent=1 // pred_fallthru
      _
    // Predicated region
    $region30: #{tpu_custom_call.1} parent=1 // pred_check
      _
    $region31: #{tpu_custom_call.1} parent=1 // pred_check_branch
      %50 = sbr.rel (0) target = $region33
    $region32: #{tpu_custom_call.1} parent=1 // pred_region
      %51 = dma.done [#allocation7], 2048
    $region33: #{tpu_custom_call.1} parent=1 // pred_fallthru
      _
    %v53 = vld [vmem:[%s0] sm:$0xff]
    %v54 = vld [vmem:[%s0 + $0x8] sm:$0xff]
    %v55 = vld [vmem:[%s0 + $0x10] sm:$0xff]
    %v56 = vld [vmem:[%s0 + $0x18] sm:$0xff]
    %v57 = vld [vmem:[%s0 + $0x20] sm:$0xff]
    %v58 = vld [vmem:[%s0 + $0x28] sm:$0xff]
    %v59 = vld [vmem:[%s0 + $0x30] sm:$0xff]
    %v60 = vld [vmem:[%s0 + $0x38] sm:$0xff]
    %v61 = vpack.c.bf16 %v54, %v53
    %v62 = vpack.c.bf16 %v56, %v55
    %v63 = vpack.c.bf16 %v58, %v57
    %v64 = vpack.c.bf16 %v60, %v59
    %v65 = vld [vmem:[%s1] sm:$0xff]
    %v66 = vld [vmem:[%s1 + $0x8] sm:$0xff]
    %v67 = vld [vmem:[%s1 + $0x10] sm:$0xff]
    %v68 = vld [vmem:[%s1 + $0x18] sm:$0x33]
    %v69 = vld [vmem:[%s3] sm:$0x3]
    %v71 = vlaneseq
    %v72 = vshrl.u32 %v71, 7
    %v73 = vsub.s32 0, %v72
    %v74 = vrot.slane %v69, %v73
    %v75 = vlaneseq
    %v76 = vshrl.u32 %v75, 7
    %v77 = vsub.s32 1, %v76
    %v78 = vrot.slane %v69, %v77
    %v85 = vunpack.c.l.b16 %v65
    %v86 = vunpack.c.h.b16 %v65
    %v87 = vunpack.c.l.b16 %v66
    %v88 = vunpack.c.h.b16 %v66
    %v89 = vunpack.c.l.b16 %v67
    %v90 = vunpack.c.h.b16 %v67
    %v91 = vunpack.c.l.b16 %v68
    %v92 = vunpack.c.h.b16 %v68
    %v93 = vpack.c.b16 %v87, %v85
    %v94 = vpack.c.b16 %v88, %v86
    %v95 = vpack.c.b16 %v91, %v89
    %v96 = vpack.c.b16 %v92, %v90
    %vm99 = vcmask 228352
    %v101 = vsel %vm99, %v61, 0
    %v104 = vsel %vm99, %v62, 0
    %v107 = vsel %vm99, %v63, 0
    %v110 = vsel %vm99, %v64, 0
    %vm112 = vcmask 1045504
    %v114 = vsel %vm112, %v95, 0
    %v117 = vsel %vm112, %v96, 0
    %119 = vmatprep.subr.bf16.mxu0 %v94
    %120 = vmatpush1.bf16.msra.mxu0 %v93
    %121 = vmatprep.subr.bf16.mxu0 %v117
    %122 = vmatpush1.bf16.msra.mxu0 %v114
    %123 = vmatprep.subr.bf16.mxu0 0
    %124 = vmatpush1.bf16.msra.mxu0 0
    %125 = vmatprep.subr.bf16.mxu0 0
    %126 = vmatpush1.bf16.msra.mxu0 0
    %127 = vmatprep.subr.bf16.mxu0 0
    %128 = vmatpush1.bf16.msra.mxu0 0
    %129 = vmatprep.subr.bf16.mxu0 0
    %130 = vmatpush1.bf16.msra.mxu0 0
    %131 = vmatprep.subr.bf16.mxu0 0
    %132 = vmatpush1.bf16.msra.mxu0 0
    %133 = vmatprep.subr.bf16.mxu0 0
    %134 = vmatpush1.bf16.msra.mxu0 0
    %135 = vmatprep.subr.bf16.mxu0 0
    %136 = vmatpush1.bf16.msra.mxu0 0
    %137 = vmatprep.subr.bf16.mxu0 0
    %138 = vmatpush1.bf16.msra.mxu0 0
    %139 = vmatprep.subr.bf16.mxu0 0
    %140 = vmatpush1.bf16.msra.mxu0 0
    %141 = vmatprep.subr.bf16.mxu0 0
    %142 = vmatpush1.bf16.msra.mxu0 0
    %143 = vmatprep.subr.bf16.mxu0 0
    %144 = vmatpush1.bf16.msra.mxu0 0
    %145 = vmatprep.subr.bf16.mxu0 0
    %146 = vmatpush1.bf16.msra.mxu0 0
    %147 = vmatprep.subr.bf16.mxu0 0
    %148 = vmatpush1.bf16.msra.mxu0 0
    %149 = vmatprep.subr.bf16.mxu0 0
    %150 = vmatpush1.bf16.msra.mxu0 0
    %151 = vmatprep.mubr.bf16.mxu0 0
    %152 = vmatmul.mubr.bf16.gmra.mrb[0].mxu0 %v101
    %v153 = vpop.f32.mrb[0].mxu0
    %v154 = vadd.f32 %v74, %v153
    %v155 = vpop.f32.mrb[0].mxu0
    %v156 = vadd.f32 %v78, %v155
    %v157 = vpop.f32.mrb[0].mxu0
    %v158 = vadd.f32 %v74, %v157
    %v159 = vpop.f32.mrb[0].mxu0
    %v160 = vadd.f32 %v78, %v159
    %161 = vmatprep.mubr.bf16.mxu0 0
    %162 = vmatmul.mubr.bf16.gmra.mrb[0].mxu0 %v104
    %v163 = vpop.f32.mrb[0].mxu0
    %v164 = vadd.f32 %v74, %v163
    %v165 = vpop.f32.mrb[0].mxu0
    %v166 = vadd.f32 %v78, %v165
    %v167 = vpop.f32.mrb[0].mxu0
    %v168 = vadd.f32 %v74, %v167
    %v169 = vpop.f32.mrb[0].mxu0
    %v170 = vadd.f32 %v78, %v169
    %171 = vmatprep.mubr.bf16.mxu0 0
    %172 = vmatmul.mubr.bf16.gmra.mrb[0].mxu0 %v107
    %v173 = vpop.f32.mrb[0].mxu0
    %v174 = vadd.f32 %v74, %v173
    %v175 = vpop.f32.mrb[0].mxu0
    %v176 = vadd.f32 %v78, %v175
    %v177 = vpop.f32.mrb[0].mxu0
    %v178 = vadd.f32 %v74, %v177
    %v179 = vpop.f32.mrb[0].mxu0
    %v180 = vadd.f32 %v78, %v179
    %181 = vmatprep.mubr.bf16.mxu0 0
    %182 = vmatmul.mubr.bf16.gmra.mrb[0].mxu0 %v110
    %v183 = vpop.f32.mrb[0].mxu0
    %v184 = vadd.f32 %v74, %v183
    %v185 = vpop.f32.mrb[0].mxu0
    %v186 = vadd.f32 %v78, %v185
    %v187 = vpop.f32.mrb[0].mxu0
    %v188 = vadd.f32 %v74, %v187
    %v189 = vpop.f32.mrb[0].mxu0
    %v190 = vadd.f32 %v78, %v189
    %191 = vdwg.mxu0
    %192 = vst [vmem:[#allocation2] sm:$0xff] %v154
    %193 = vst [vmem:[#allocation2 + $0x8] sm:$0xff] %v156
    %194 = vst [vmem:[#allocation2 + $0x10] sm:$0xff] %v158
    %195 = vst [vmem:[#allocation2 + $0x18] sm:$0xff] %v160
    %196 = vst [vmem:[#allocation2 + $0x20] sm:$0xff] %v164
    %197 = vst [vmem:[#allocation2 + $0x28] sm:$0xff] %v166
    %198 = vst [vmem:[#allocation2 + $0x30] sm:$0xff] %v168
    %199 = vst [vmem:[#allocation2 + $0x38] sm:$0xff] %v170
    %200 = vst [vmem:[#allocation2 + $0x40] sm:$0xff] %v174
    %201 = vst [vmem:[#allocation2 + $0x48] sm:$0xff] %v176
    %202 = vst [vmem:[#allocation2 + $0x50] sm:$0xff] %v178
    %203 = vst [vmem:[#allocation2 + $0x58] sm:$0xff] %v180
    %204 = vst [vmem:[#allocation2 + $0x60] sm:$0xff] %v184
    %205 = vst [vmem:[#allocation2 + $0x68] sm:$0xff] %v186
    %206 = vst [vmem:[#allocation2 + $0x70] sm:$0xff] %v188
    %207 = vst [vmem:[#allocation2 + $0x78] sm:$0xff] %v190
    %v208 = vld [vmem:[#allocation3] sm:$0xff]
    %v209 = vld [vmem:[#allocation3 + $0x8] sm:$0xff]
    %v210 = vld [vmem:[#allocation3 + $0x10] sm:$0xff]
    %v211 = vld [vmem:[#allocation3 + $0x18] sm:$0xff]
    %v212 = vld [vmem:[#allocation3 + $0x20] sm:$0xff]
    %v213 = vld [vmem:[#allocation3 + $0x28] sm:$0xff]
    %v214 = vld [vmem:[#allocation3 + $0x30] sm:$0xff]
    %v215 = vld [vmem:[#allocation3 + $0x38] sm:$0xff]
    %v216 = vld [vmem:[#allocation3 + $0x40] sm:$0xff]
    %v217 = vld [vmem:[#allocation3 + $0x48] sm:$0xff]
    %v218 = vld [vmem:[#allocation3 + $0x50] sm:$0xff]
    %v219 = vld [vmem:[#allocation3 + $0x58] sm:$0xff]
    %v220 = vld [vmem:[#allocation3 + $0x60] sm:$0xff]
    %v221 = vld [vmem:[#allocation3 + $0x68] sm:$0xff]
    %v222 = vld [vmem:[#allocation3 + $0x70] sm:$0xff]
    %v223 = vld [vmem:[#allocation3 + $0x78] sm:$0xff]
    %v224 = vlaneseq
    %v225 = vand.u32 %v224, 127
    %vm226 = vcmp.lt.s32.totalorder %v225, 64
    %v227 = vsel %vm226, 2.0, 1.0
    %v228 = vsel %vm226, -1.0, 0.0
    %s229 = smul.u32 0, 2
    %s230 = smul.addr %s229, 8
    %s231 = scalar_lea.vmem [#allocation2], %s230
    %v232 = vld [vmem:[%s231] sm:$0xff]
    %v233 = vld [vmem:[%s231 + $0x8] sm:$0xff]
    %v250 = vunpack.c.l.b16 %v208
    %v251 = vunpack.c.h.b16 %v208
    %v252 = vunpack.c.l.b16 %v209
    %v253 = vunpack.c.h.b16 %v209
    %v254 = vunpack.c.l.b16 %v210
    %v255 = vunpack.c.h.b16 %v210
    %v256 = vunpack.c.l.b16 %v211
    %v257 = vunpack.c.h.b16 %v211
    %v258 = vunpack.c.l.b16 %v212
    %v259 = vunpack.c.h.b16 %v212
    %v260 = vunpack.c.l.b16 %v213
    %v261 = vunpack.c.h.b16 %v213
    %v262 = vunpack.c.l.b16 %v214
    %v263 = vunpack.c.h.b16 %v214
    %v264 = vunpack.c.l.b16 %v215
    %v265 = vunpack.c.h.b16 %v215
    %v266 = vunpack.c.l.b16 %v216
    %v267 = vunpack.c.h.b16 %v216
    %v268 = vunpack.c.l.b16 %v217
    %v269 = vunpack.c.h.b16 %v217
    %v270 = vunpack.c.l.b16 %v218
    %v271 = vunpack.c.h.b16 %v218
    %v272 = vunpack.c.l.b16 %v219
    %v273 = vunpack.c.h.b16 %v219
    %v274 = vunpack.c.l.b16 %v220
    %v275 = vunpack.c.h.b16 %v220
    %v276 = vunpack.c.l.b16 %v221
    %v277 = vunpack.c.h.b16 %v221
    %v278 = vunpack.c.l.b16 %v222
    %v279 = vunpack.c.h.b16 %v222
    %v280 = vunpack.c.l.b16 %v223
    %v281 = vunpack.c.h.b16 %v223
    %v282 = vpack.c.b16 %v252, %v250
    %v283 = vpack.c.b16 %v253, %v251
    %v284 = vpack.c.b16 %v256, %v254
    %v285 = vpack.c.b16 %v257, %v255
    %v286 = vpack.c.b16 %v260, %v258
    %v287 = vpack.c.b16 %v261, %v259
    %v288 = vpack.c.b16 %v264, %v262
    %v289 = vpack.c.b16 %v265, %v263
    %v290 = vpack.c.b16 %v268, %v266
    %v291 = vpack.c.b16 %v269, %v267
    %v292 = vpack.c.b16 %v272, %v270
    %v293 = vpack.c.b16 %v273, %v271
    %v294 = vpack.c.b16 %v276, %v274
    %v295 = vpack.c.b16 %v277, %v275
    %v296 = vpack.c.b16 %v280, %v278
    %v297 = vpack.c.b16 %v281, %v279
    %314 = vmatprep.subr.bf16.mxu0 %v283
    %315 = vmatpush1.bf16.msra.mxu0 %v282
    %316 = vmatprep.subr.bf16.mxu0 %v285
    %317 = vmatpush1.bf16.msra.mxu0 %v284
    %318 = vmatprep.subr.bf16.mxu0 %v287
    %319 = vmatpush1.bf16.msra.mxu0 %v286
    %320 = vmatprep.subr.bf16.mxu0 %v289
    %321 = vmatpush1.bf16.msra.mxu0 %v288
    %322 = vmatprep.subr.bf16.mxu0 %v291
    %323 = vmatpush1.bf16.msra.mxu0 %v290
    %324 = vmatprep.subr.bf16.mxu0 %v293
    %325 = vmatpush1.bf16.msra.mxu0 %v292
    %326 = vmatprep.subr.bf16.mxu0 %v295
    %327 = vmatpush1.bf16.msra.mxu0 %v294
    %328 = vmatprep.subr.bf16.mxu0 %v297
    %329 = vmatpush1.bf16.msra.mxu0 %v296
    %330 = vmatprep.subr.bf16.mxu0 0
    %331 = vmatpush1.bf16.msra.mxu0 0
    %332 = vmatprep.subr.bf16.mxu0 0
    %333 = vmatpush1.bf16.msra.mxu0 0
    %334 = vmatprep.subr.bf16.mxu0 0
    %335 = vmatpush1.bf16.msra.mxu0 0
    %336 = vmatprep.subr.bf16.mxu0 0
    %337 = vmatpush1.bf16.msra.mxu0 0
    %338 = vmatprep.subr.bf16.mxu0 0
    %339 = vmatpush1.bf16.msra.mxu0 0
    %340 = vmatprep.subr.bf16.mxu0 0
    %341 = vmatpush1.bf16.msra.mxu0 0
    %342 = vmatprep.subr.bf16.mxu0 0
    %343 = vmatpush1.bf16.msra.mxu0 0
    %344 = vmatprep.subr.bf16.mxu0 0
    %345 = vmatpush1.bf16.msra.mxu0 0
    %346 = vmatprep.mubr.bf16.mxu0 0
    %347 = vmatmul.mubr.bf16.gmra.mrb[0].mxu0 0
    %v348 = vpop.f32.mrb[0].mxu0
    %v349 = vadd.f32 0.0, %v348
    %v350 = vpop.f32.mrb[0].mxu0
    %v351 = vadd.f32 0.0, %v350
    %v352 = vpop.f32.mrb[0].mxu0
    %v353 = vpop.f32.mrb[0].mxu0
    %354 = vdwg.mxu0
    %v355 = vadd.f32 %v232, %v349
    %v356 = vadd.f32 %v233, %v351
    %v357 = vxor.u32 %v355, 2147483648
    %v358 = vxor.u32 %v356, 2147483648
    %v359 = vmul.f32 %v357, 1.442695
    %v360 = vpow.pop %v359
    %v361 = vmul.f32 %v358, 1.442695
    %v362 = vpow.pop %v361
    %v363 = vadd.f32 %v360, 1.0
    %v364 = vadd.f32 %v362, 1.0
    %v365 = vrcp.pop %v363
    %v366 = vmul.f32 1.0, %v365
    %v367 = vrcp.pop %v364
    %v368 = vmul.f32 1.0, %v367
    %v369 = vmul.f32 %v368, %v227
    %v370 = vadd.f32 %v369, %v228
    %v371 = vmul.f32 %v366, %v370
    %v372 = vmul.f32 %v366, 0.0
    %373 = vrot.lane.b32.xlu0 %v372, 64
    %v374 = vpop.permute.xlu0 %373
    %v375 = vadd.f32 %v371, %v374
    %376 = vrot.lane.b32.xlu0 %v375, 64
    %v377 = vpop.permute.xlu0 %376
    %v378 = vsel %vm226, %v375, %v377
    %v379 = vtanh.pop %v378
    %v380 = vmul.f32 %v370, %v379
    %s381 = smul.u32 1, 2
    %s382 = smul.addr %s381, 8
    %s383 = scalar_lea.vmem [#allocation2], %s382
    %v384 = vld [vmem:[%s383] sm:$0xff]
    %v385 = vld [vmem:[%s383 + $0x8] sm:$0xff]
    %v386 = vpack.c.bf16 %v380, %v380
    %387 = vmatprep.subr.bf16.mxu0 %v283
    %388 = vmatpush1.bf16.msra.mxu0 %v282
    %389 = vmatprep.subr.bf16.mxu0 %v285
    %390 = vmatpush1.bf16.msra.mxu0 %v284
    %391 = vmatprep.subr.bf16.mxu0 %v287
    %392 = vmatpush1.bf16.msra.mxu0 %v286
    %393 = vmatprep.subr.bf16.mxu0 %v289
    %394 = vmatpush1.bf16.msra.mxu0 %v288
    %395 = vmatprep.subr.bf16.mxu0 %v291
    %396 = vmatpush1.bf16.msra.mxu0 %v290
    %397 = vmatprep.subr.bf16.mxu0 %v293
    %398 = vmatpush1.bf16.msra.mxu0 %v292
    %399 = vmatprep.subr.bf16.mxu0 %v295
    %400 = vmatpush1.bf16.msra.mxu0 %v294
    %401 = vmatprep.subr.bf16.mxu0 %v297
    %402 = vmatpush1.bf16.msra.mxu0 %v296
    %403 = vmatprep.subr.bf16.mxu0 0
    %404 = vmatpush1.bf16.msra.mxu0 0
    %405 = vmatprep.subr.bf16.mxu0 0
    %406 = vmatpush1.bf16.msra.mxu0 0
    %407 = vmatprep.subr.bf16.mxu0 0
    %408 = vmatpush1.bf16.msra.mxu0 0
    %409 = vmatprep.subr.bf16.mxu0 0
    %410 = vmatpush1.bf16.msra.mxu0 0
    %411 = vmatprep.subr.bf16.mxu0 0
    %412 = vmatpush1.bf16.msra.mxu0 0
    %413 = vmatprep.subr.bf16.mxu0 0
    %414 = vmatpush1.bf16.msra.mxu0 0
    %415 = vmatprep.subr.bf16.mxu0 0
    %416 = vmatpush1.bf16.msra.mxu0 0
    %417 = vmatprep.subr.bf16.mxu0 0
    %418 = vmatpush1.bf16.msra.mxu0 0
    %419 = vmatprep.mubr.bf16.mxu0 0
    %420 = vmatmul.mubr.bf16.gmra.mrb[0].mxu0 %v386
    %v421 = vpop.f32.mrb[0].mxu0
    %v422 = vadd.f32 0.0, %v421
    %v423 = vpop.f32.mrb[0].mxu0
    %v424 = vadd.f32 0.0, %v423
    %v425 = vpop.f32.mrb[0].mxu0
    %v426 = vpop.f32.mrb[0].mxu0
    %427 = vdwg.mxu0
    %v428 = vadd.f32 %v384, %v422
    %v429 = vadd.f32 %v385, %v424
    %v430 = vxor.u32 %v428, 2147483648
    %v431 = vxor.u32 %v429, 2147483648
    %v432 = vmul.f32 %v430, 1.442695
    %v433 = vpow.pop %v432
    %v434 = vmul.f32 %v431, 1.442695
    %v435 = vpow.pop %v434
    %v436 = vadd.f32 %v433, 1.0
    %v437 = vadd.f32 %v435, 1.0
    %v438 = vrcp.pop %v436
    %v439 = vmul.f32 1.0, %v438
    %v440 = vrcp.pop %v437
    %v441 = vmul.f32 1.0, %v440
    %v442 = vmul.f32 %v441, %v227
    %v443 = vadd.f32 %v442, %v228
    %v444 = vmul.f32 %v439, %v443
    %v445 = vmul.f32 %v439, %v378
    %446 = vrot.lane.b32.xlu0 %v445, 64
    %v447 = vpop.permute.xlu0 %446
    %v448 = vadd.f32 %v444, %v447
    %449 = vrot.lane.b32.xlu0 %v448, 64
    %v450 = vpop.permute.xlu0 %449
    %v451 = vsel %vm226, %v448, %v450
    %v452 = vtanh.pop %v451
    %v453 = vmul.f32 %v443, %v452
    %s454 = smul.u32 2, 2
    %s455 = smul.addr %s454, 8
    %s456 = scalar_lea.vmem [#allocation2], %s455
    %v457 = vld [vmem:[%s456] sm:$0xff]
    %v458 = vld [vmem:[%s456 + $0x8] sm:$0xff]
    %v459 = vpack.c.bf16 %v453, %v453
    %460 = vmatprep.subr.bf16.mxu0 %v283
    %461 = vmatpush1.bf16.msra.mxu0 %v282
    %462 = vmatprep.subr.bf16.mxu0 %v285
    %463 = vmatpush1.bf16.msra.mxu0 %v284
    %464 = vmatprep.subr.bf16.mxu0 %v287
    %465 = vmatpush1.bf16.msra.mxu0 %v286
    %466 = vmatprep.subr.bf16.mxu0 %v289
    %467 = vmatpush1.bf16.msra.mxu0 %v288
    %468 = vmatprep.subr.bf16.mxu0 %v291
    %469 = vmatpush1.bf16.msra.mxu0 %v290
    %470 = vmatprep.subr.bf16.mxu0 %v293
    %471 = vmatpush1.bf16.msra.mxu0 %v292
    %472 = vmatprep.subr.bf16.mxu0 %v295
    %473 = vmatpush1.bf16.msra.mxu0 %v294
    %474 = vmatprep.subr.bf16.mxu0 %v297
    %475 = vmatpush1.bf16.msra.mxu0 %v296
    %476 = vmatprep.subr.bf16.mxu0 0
    %477 = vmatpush1.bf16.msra.mxu0 0
    %478 = vmatprep.subr.bf16.mxu0 0
    %479 = vmatpush1.bf16.msra.mxu0 0
    %480 = vmatprep.subr.bf16.mxu0 0
    %481 = vmatpush1.bf16.msra.mxu0 0
    %482 = vmatprep.subr.bf16.mxu0 0
    %483 = vmatpush1.bf16.msra.mxu0 0
    %484 = vmatprep.subr.bf16.mxu0 0
    %485 = vmatpush1.bf16.msra.mxu0 0
    %486 = vmatprep.subr.bf16.mxu0 0
    %487 = vmatpush1.bf16.msra.mxu0 0
    %488 = vmatprep.subr.bf16.mxu0 0
    %489 = vmatpush1.bf16.msra.mxu0 0
    %490 = vmatprep.subr.bf16.mxu0 0
    %491 = vmatpush1.bf16.msra.mxu0 0
    %492 = vmatprep.mubr.bf16.mxu0 0
    %493 = vmatmul.mubr.bf16.gmra.mrb[0].mxu0 %v459
    %v494 = vpop.f32.mrb[0].mxu0
    %v495 = vadd.f32 0.0, %v494
    %v496 = vpop.f32.mrb[0].mxu0
    %v497 = vadd.f32 0.0, %v496
    %v498 = vpop.f32.mrb[0].mxu0
    %v499 = vpop.f32.mrb[0].mxu0
    %500 = vdwg.mxu0
    %v501 = vadd.f32 %v457, %v495
    %v502 = vadd.f32 %v458, %v497
    %v503 = vxor.u32 %v501, 2147483648
    %v504 = vxor.u32 %v502, 2147483648
    %v505 = vmul.f32 %v503, 1.442695
    %v506 = vpow.pop %v505
    %v507 = vmul.f32 %v504, 1.442695
    %v508 = vpow.pop %v507
    %v509 = vadd.f32 %v506, 1.0
    %v510 = vadd.f32 %v508, 1.0
    %v511 = vrcp.pop %v509
    %v512 = vmul.f32 1.0, %v511
    %v513 = vrcp.pop %v510
    %v514 = vmul.f32 1.0, %v513
    %v515 = vmul.f32 %v514, %v227
    %v516 = vadd.f32 %v515, %v228
    %v517 = vmul.f32 %v512, %v516
    %v518 = vmul.f32 %v512, %v451
    %519 = vrot.lane.b32.xlu0 %v518, 64
    %v520 = vpop.permute.xlu0 %519
    %v521 = vadd.f32 %v517, %v520
    %522 = vrot.lane.b32.xlu0 %v521, 64
    %v523 = vpop.permute.xlu0 %522
    %v524 = vsel %vm226, %v521, %v523
    %v525 = vtanh.pop %v524
    %v526 = vmul.f32 %v516, %v525
    %s527 = smul.u32 3, 2
    %s528 = smul.addr %s527, 8
    %s529 = scalar_lea.vmem [#allocation2], %s528
    %v530 = vld [vmem:[%s529] sm:$0xff]
    %v531 = vld [vmem:[%s529 + $0x8] sm:$0xff]
    %v532 = vpack.c.bf16 %v526, %v526
    %533 = vmatprep.subr.bf16.mxu0 %v283
    %534 = vmatpush1.bf16.msra.mxu0 %v282
    %535 = vmatprep.subr.bf16.mxu0 %v285
    %536 = vmatpush1.bf16.msra.mxu0 %v284
    %537 = vmatprep.subr.bf16.mxu0 %v287
    %538 = vmatpush1.bf16.msra.mxu0 %v286
    %539 = vmatprep.subr.bf16.mxu0 %v289
    %540 = vmatpush1.bf16.msra.mxu0 %v288
    %541 = vmatprep.subr.bf16.mxu0 %v291
    %542 = vmatpush1.bf16.msra.mxu0 %v290
    %543 = vmatprep.subr.bf16.mxu0 %v293
    %544 = vmatpush1.bf16.msra.mxu0 %v292
    %545 = vmatprep.subr.bf16.mxu0 %v295
    %546 = vmatpush1.bf16.msra.mxu0 %v294
    %547 = vmatprep.subr.bf16.mxu0 %v297
    %548 = vmatpush1.bf16.msra.mxu0 %v296
    %549 = vmatprep.subr.bf16.mxu0 0
    %550 = vmatpush1.bf16.msra.mxu0 0
    %551 = vmatprep.subr.bf16.mxu0 0
    %552 = vmatpush1.bf16.msra.mxu0 0
    %553 = vmatprep.subr.bf16.mxu0 0
    %554 = vmatpush1.bf16.msra.mxu0 0
    %555 = vmatprep.subr.bf16.mxu0 0
    %556 = vmatpush1.bf16.msra.mxu0 0
    %557 = vmatprep.subr.bf16.mxu0 0
    %558 = vmatpush1.bf16.msra.mxu0 0
    %559 = vmatprep.subr.bf16.mxu0 0
    %560 = vmatpush1.bf16.msra.mxu0 0
    %561 = vmatprep.subr.bf16.mxu0 0
    %562 = vmatpush1.bf16.msra.mxu0 0
    %563 = vmatprep.subr.bf16.mxu0 0
    %564 = vmatpush1.bf16.msra.mxu0 0
    %565 = vmatprep.mubr.bf16.mxu0 0
    %566 = vmatmul.mubr.bf16.gmra.mrb[0].mxu0 %v532
    %v567 = vpop.f32.mrb[0].mxu0
    %v568 = vadd.f32 0.0, %v567
    %v569 = vpop.f32.mrb[0].mxu0
    %v570 = vadd.f32 0.0, %v569
    %v571 = vpop.f32.mrb[0].mxu0
    %v572 = vpop.f32.mrb[0].mxu0
    %573 = vdwg.mxu0
    %v574 = vadd.f32 %v530, %v568
    %v575 = vadd.f32 %v531, %v570
    %v576 = vxor.u32 %v574, 2147483648
    %v577 = vxor.u32 %v575, 2147483648
    %v578 = vmul.f32 %v576, 1.442695
    %v579 = vpow.pop %v578
    %v580 = vmul.f32 %v577, 1.442695
    %v581 = vpow.pop %v580
    %v582 = vadd.f32 %v579, 1.0
    %v583 = vadd.f32 %v581, 1.0
    %v584 = vrcp.pop %v582
    %v585 = vmul.f32 1.0, %v584
    %v586 = vrcp.pop %v583
    %v587 = vmul.f32 1.0, %v586
    %v588 = vmul.f32 %v587, %v227
    %v589 = vadd.f32 %v588, %v228
    %v590 = vmul.f32 %v585, %v589
    %v591 = vmul.f32 %v585, %v524
    %592 = vrot.lane.b32.xlu0 %v591, 64
    %v593 = vpop.permute.xlu0 %592
    %v594 = vadd.f32 %v590, %v593
    %595 = vrot.lane.b32.xlu0 %v594, 64
    %v596 = vpop.permute.xlu0 %595
    %v597 = vsel %vm226, %v594, %v596
    %v598 = vtanh.pop %v597
    %v599 = vmul.f32 %v589, %v598
    %s600 = smul.u32 4, 2
    %s601 = smul.addr %s600, 8
    %s602 = scalar_lea.vmem [#allocation2], %s601
    %v603 = vld [vmem:[%s602] sm:$0xff]
    %v604 = vld [vmem:[%s602 + $0x8] sm:$0xff]
    %v605 = vpack.c.bf16 %v599, %v599
    %606 = vmatprep.subr.bf16.mxu0 %v283
    %607 = vmatpush1.bf16.msra.mxu0 %v282
    %608 = vmatprep.subr.bf16.mxu0 %v285
    %609 = vmatpush1.bf16.msra.mxu0 %v284
    %610 = vmatprep.subr.bf16.mxu0 %v287
    %611 = vmatpush1.bf16.msra.mxu0 %v286
    %612 = vmatprep.subr.bf16.mxu0 %v289
    %613 = vmatpush1.bf16.msra.mxu0 %v288
    %614 = vmatprep.subr.bf16.mxu0 %v291
    %615 = vmatpush1.bf16.msra.mxu0 %v290
    %616 = vmatprep.subr.bf16.mxu0 %v293
    %617 = vmatpush1.bf16.msra.mxu0 %v292
    %618 = vmatprep.subr.bf16.mxu0 %v295
    %619 = vmatpush1.bf16.msra.mxu0 %v294
    %620 = vmatprep.subr.bf16.mxu0 %v297
    %621 = vmatpush1.bf16.msra.mxu0 %v296
    %622 = vmatprep.subr.bf16.mxu0 0
    %623 = vmatpush1.bf16.msra.mxu0 0
    %624 = vmatprep.subr.bf16.mxu0 0
    %625 = vmatpush1.bf16.msra.mxu0 0
    %626 = vmatprep.subr.bf16.mxu0 0
    %627 = vmatpush1.bf16.msra.mxu0 0
    %628 = vmatprep.subr.bf16.mxu0 0
    %629 = vmatpush1.bf16.msra.mxu0 0
    %630 = vmatprep.subr.bf16.mxu0 0
    %631 = vmatpush1.bf16.msra.mxu0 0
    %632 = vmatprep.subr.bf16.mxu0 0
    %633 = vmatpush1.bf16.msra.mxu0 0
    %634 = vmatprep.subr.bf16.mxu0 0
    %635 = vmatpush1.bf16.msra.mxu0 0
    %636 = vmatprep.subr.bf16.mxu0 0
    %637 = vmatpush1.bf16.msra.mxu0 0
    %638 = vmatprep.mubr.bf16.mxu0 0
    %639 = vmatmul.mubr.bf16.gmra.mrb[0].mxu0 %v605
    %v640 = vpop.f32.mrb[0].mxu0
    %v641 = vadd.f32 0.0, %v640
    %v642 = vpop.f32.mrb[0].mxu0
    %v643 = vadd.f32 0.0, %v642
    %v644 = vpop.f32.mrb[0].mxu0
    %v645 = vpop.f32.mrb[0].mxu0
    %646 = vdwg.mxu0
    %v647 = vadd.f32 %v603, %v641
    %v648 = vadd.f32 %v604, %v643
    %v649 = vxor.u32 %v647, 2147483648
    %v650 = vxor.u32 %v648, 2147483648
    %v651 = vmul.f32 %v649, 1.442695
    %v652 = vpow.pop %v651
    %v653 = vmul.f32 %v650, 1.442695
    %v654 = vpow.pop %v653
    %v655 = vadd.f32 %v652, 1.0
    %v656 = vadd.f32 %v654, 1.0
    %v657 = vrcp.pop %v655
    %v658 = vmul.f32 1.0, %v657
    %v659 = vrcp.pop %v656
    %v660 = vmul.f32 1.0, %v659
    %v661 = vmul.f32 %v660, %v227
    %v662 = vadd.f32 %v661, %v228
    %v663 = vmul.f32 %v658, %v662
    %v664 = vmul.f32 %v658, %v597
    %665 = vrot.lane.b32.xlu0 %v664, 64
    %v666 = vpop.permute.xlu0 %665
    %v667 = vadd.f32 %v663, %v666
    %668 = vrot.lane.b32.xlu0 %v667, 64
    %v669 = vpop.permute.xlu0 %668
    %v670 = vsel %vm226, %v667, %v669
    %v671 = vtanh.pop %v670
    %v672 = vmul.f32 %v662, %v671
    %s673 = smul.u32 5, 2
    %s674 = smul.addr %s673, 8
    %s675 = scalar_lea.vmem [#allocation2], %s674
    %v676 = vld [vmem:[%s675] sm:$0xff]
    %v677 = vld [vmem:[%s675 + $0x8] sm:$0xff]
    %v678 = vpack.c.bf16 %v672, %v672
    %679 = vmatprep.subr.bf16.mxu0 %v283
    %680 = vmatpush1.bf16.msra.mxu0 %v282
    %681 = vmatprep.subr.bf16.mxu0 %v285
    %682 = vmatpush1.bf16.msra.mxu0 %v284
    %683 = vmatprep.subr.bf16.mxu0 %v287
    %684 = vmatpush1.bf16.msra.mxu0 %v286
    %685 = vmatprep.subr.bf16.mxu0 %v289
    %686 = vmatpush1.bf16.msra.mxu0 %v288
    %687 = vmatprep.subr.bf16.mxu0 %v291
    %688 = vmatpush1.bf16.msra.mxu0 %v290
    %689 = vmatprep.subr.bf16.mxu0 %v293
    %690 = vmatpush1.bf16.msra.mxu0 %v292
    %691 = vmatprep.subr.bf16.mxu0 %v295
    %692 = vmatpush1.bf16.msra.mxu0 %v294
    %693 = vmatprep.subr.bf16.mxu0 %v297
    %694 = vmatpush1.bf16.msra.mxu0 %v296
    %695 = vmatprep.subr.bf16.mxu0 0
    %696 = vmatpush1.bf16.msra.mxu0 0
    %697 = vmatprep.subr.bf16.mxu0 0
    %698 = vmatpush1.bf16.msra.mxu0 0
    %699 = vmatprep.subr.bf16.mxu0 0
    %700 = vmatpush1.bf16.msra.mxu0 0
    %701 = vmatprep.subr.bf16.mxu0 0
    %702 = vmatpush1.bf16.msra.mxu0 0
    %703 = vmatprep.subr.bf16.mxu0 0
    %704 = vmatpush1.bf16.msra.mxu0 0
    %705 = vmatprep.subr.bf16.mxu0 0
    %706 = vmatpush1.bf16.msra.mxu0 0
    %707 = vmatprep.subr.bf16.mxu0 0
    %708 = vmatpush1.bf16.msra.mxu0 0
    %709 = vmatprep.subr.bf16.mxu0 0
    %710 = vmatpush1.bf16.msra.mxu0 0
    %711 = vmatprep.mubr.bf16.mxu0 0
    %712 = vmatmul.mubr.bf16.gmra.mrb[0].mxu0 %v678
    %v713 = vpop.f32.mrb[0].mxu0
    %v714 = vadd.f32 0.0, %v713
    %v715 = vpop.f32.mrb[0].mxu0
    %v716 = vadd.f32 0.0, %v715
    %v717 = vpop.f32.mrb[0].mxu0
    %v718 = vpop.f32.mrb[0].mxu0
    %719 = vdwg.mxu0
    %v720 = vadd.f32 %v676, %v714
    %v721 = vadd.f32 %v677, %v716
    %v722 = vxor.u32 %v720, 2147483648
    %v723 = vxor.u32 %v721, 2147483648
    %v724 = vmul.f32 %v722, 1.442695
    %v725 = vpow.pop %v724
    %v726 = vmul.f32 %v723, 1.442695
    %v727 = vpow.pop %v726
    %v728 = vadd.f32 %v725, 1.0
    %v729 = vadd.f32 %v727, 1.0
    %v730 = vrcp.pop %v728
    %v731 = vmul.f32 1.0, %v730
    %v732 = vrcp.pop %v729
    %v733 = vmul.f32 1.0, %v732
    %v734 = vmul.f32 %v733, %v227
    %v735 = vadd.f32 %v734, %v228
    %v736 = vmul.f32 %v731, %v735
    %v737 = vmul.f32 %v731, %v670
    %738 = vrot.lane.b32.xlu0 %v737, 64
    %v739 = vpop.permute.xlu0 %738
    %v740 = vadd.f32 %v736, %v739
    %741 = vrot.lane.b32.xlu0 %v740, 64
    %v742 = vpop.permute.xlu0 %741
    %v743 = vsel %vm226, %v740, %v742
    %v744 = vtanh.pop %v743
    %v745 = vmul.f32 %v735, %v744
    %s746 = smul.u32 6, 2
    %s747 = smul.addr %s746, 8
    %s748 = scalar_lea.vmem [#allocation2], %s747
    %v749 = vld [vmem:[%s748] sm:$0xff]
    %v750 = vld [vmem:[%s748 + $0x8] sm:$0xff]
    %v751 = vpack.c.bf16 %v745, %v745
    %752 = vmatprep.subr.bf16.mxu0 %v283
    %753 = vmatpush1.bf16.msra.mxu0 %v282
    %754 = vmatprep.subr.bf16.mxu0 %v285
    %755 = vmatpush1.bf16.msra.mxu0 %v284
    %756 = vmatprep.subr.bf16.mxu0 %v287
    %757 = vmatpush1.bf16.msra.mxu0 %v286
    %758 = vmatprep.subr.bf16.mxu0 %v289
    %759 = vmatpush1.bf16.msra.mxu0 %v288
    %760 = vmatprep.subr.bf16.mxu0 %v291
    %761 = vmatpush1.bf16.msra.mxu0 %v290
    %762 = vmatprep.subr.bf16.mxu0 %v293
    %763 = vmatpush1.bf16.msra.mxu0 %v292
    %764 = vmatprep.subr.bf16.mxu0 %v295
    %765 = vmatpush1.bf16.msra.mxu0 %v294
    %766 = vmatprep.subr.bf16.mxu0 %v297
    %767 = vmatpush1.bf16.msra.mxu0 %v296
    %768 = vmatprep.subr.bf16.mxu0 0
    %769 = vmatpush1.bf16.msra.mxu0 0
    %770 = vmatprep.subr.bf16.mxu0 0
    %771 = vmatpush1.bf16.msra.mxu0 0
    %772 = vmatprep.subr.bf16.mxu0 0
    %773 = vmatpush1.bf16.msra.mxu0 0
    %774 = vmatprep.subr.bf16.mxu0 0
    %775 = vmatpush1.bf16.msra.mxu0 0
    %776 = vmatprep.subr.bf16.mxu0 0
    %777 = vmatpush1.bf16.msra.mxu0 0
    %778 = vmatprep.subr.bf16.mxu0 0
    %779 = vmatpush1.bf16.msra.mxu0 0
    %780 = vmatprep.subr.bf16.mxu0 0
    %781 = vmatpush1.bf16.msra.mxu0 0
    %782 = vmatprep.subr.bf16.mxu0 0
    %783 = vmatpush1.bf16.msra.mxu0 0
    %784 = vmatprep.mubr.bf16.mxu0 0
    %785 = vmatmul.mubr.bf16.gmra.mrb[0].mxu0 %v751
    %v786 = vpop.f32.mrb[0].mxu0
    %v787 = vadd.f32 0.0, %v786
    %v788 = vpop.f32.mrb[0].mxu0
    %v789 = vadd.f32 0.0, %v788
    %v790 = vpop.f32.mrb[0].mxu0
    %v791 = vpop.f32.mrb[0].mxu0
    %792 = vdwg.mxu0
    %v793 = vadd.f32 %v749, %v787
    %v794 = vadd.f32 %v750, %v789
    %v795 = vxor.u32 %v793, 2147483648
    %v796 = vxor.u32 %v794, 2147483648
    %v797 = vmul.f32 %v795, 1.442695
    %v798 = vpow.pop %v797
    %v799 = vmul.f32 %v796, 1.442695
    %v800 = vpow.pop %v799
    %v801 = vadd.f32 %v798, 1.0
    %v802 = vadd.f32 %v800, 1.0
    %v803 = vrcp.pop %v801
    %v804 = vmul.f32 1.0, %v803
    %v805 = vrcp.pop %v802
    %v806 = vmul.f32 1.0, %v805
    %v807 = vmul.f32 %v806, %v227
    %v808 = vadd.f32 %v807, %v228
    %v809 = vmul.f32 %v804, %v808
    %v810 = vmul.f32 %v804, %v743
    %811 = vrot.lane.b32.xlu0 %v810, 64
    %v812 = vpop.permute.xlu0 %811
    %v813 = vadd.f32 %v809, %v812
    %814 = vrot.lane.b32.xlu0 %v813, 64
    %v815 = vpop.permute.xlu0 %814
    %v816 = vsel %vm226, %v813, %v815
    %v817 = vtanh.pop %v816
    %v818 = vmul.f32 %v808, %v817
    %s819 = smul.u32 7, 2
    %s820 = smul.addr %s819, 8
    %s821 = scalar_lea.vmem [#allocation2], %s820
    %v822 = vld [vmem:[%s821] sm:$0xff]
    %v823 = vld [vmem:[%s821 + $0x8] sm:$0xff]
    %v824 = vpack.c.bf16 %v818, %v818
    %825 = vmatprep.subr.bf16.mxu0 %v283
    %826 = vmatpush1.bf16.msra.mxu0 %v282
    %827 = vmatprep.subr.bf16.mxu0 %v285
    %828 = vmatpush1.bf16.msra.mxu0 %v284
    %829 = vmatprep.subr.bf16.mxu0 %v287
    %830 = vmatpush1.bf16.msra.mxu0 %v286
    %831 = vmatprep.subr.bf16.mxu0 %v289
    %832 = vmatpush1.bf16.msra.mxu0 %v288
    %833 = vmatprep.subr.bf16.mxu0 %v291
    %834 = vmatpush1.bf16.msra.mxu0 %v290
    %835 = vmatprep.subr.bf16.mxu0 %v293
    %836 = vmatpush1.bf16.msra.mxu0 %v292
    %837 = vmatprep.subr.bf16.mxu0 %v295
    %838 = vmatpush1.bf16.msra.mxu0 %v294
    %839 = vmatprep.subr.bf16.mxu0 %v297
    %840 = vmatpush1.bf16.msra.mxu0 %v296
    %841 = vmatprep.subr.bf16.mxu0 0
    %842 = vmatpush1.bf16.msra.mxu0 0
    %843 = vmatprep.subr.bf16.mxu0 0
    %844 = vmatpush1.bf16.msra.mxu0 0
    %845 = vmatprep.subr.bf16.mxu0 0
    %846 = vmatpush1.bf16.msra.mxu0 0
    %847 = vmatprep.subr.bf16.mxu0 0
    %848 = vmatpush1.bf16.msra.mxu0 0
    %849 = vmatprep.subr.bf16.mxu0 0
    %850 = vmatpush1.bf16.msra.mxu0 0
    %851 = vmatprep.subr.bf16.mxu0 0
    %852 = vmatpush1.bf16.msra.mxu0 0
    %853 = vmatprep.subr.bf16.mxu0 0
    %854 = vmatpush1.bf16.msra.mxu0 0
    %855 = vmatprep.subr.bf16.mxu0 0
    %856 = vmatpush1.bf16.msra.mxu0 0
    %857 = vmatprep.mubr.bf16.mxu0 0
    %858 = vmatmul.mubr.bf16.gmra.mrb[0].mxu0 %v824
    %v859 = vpop.f32.mrb[0].mxu0
    %v860 = vadd.f32 0.0, %v859
    %v861 = vpop.f32.mrb[0].mxu0
    %v862 = vadd.f32 0.0, %v861
    %v863 = vpop.f32.mrb[0].mxu0
    %v864 = vpop.f32.mrb[0].mxu0
    %865 = vdwg.mxu0
    %v866 = vadd.f32 %v822, %v860
    %v867 = vadd.f32 %v823, %v862
    %v868 = vxor.u32 %v866, 2147483648
    %v869 = vxor.u32 %v867, 2147483648
    %v870 = vmul.f32 %v868, 1.442695
    %v871 = vpow.pop %v870
    %v872 = vmul.f32 %v869, 1.442695
    %v873 = vpow.pop %v872
    %v874 = vadd.f32 %v871, 1.0
    %v875 = vadd.f32 %v873, 1.0
    %v876 = vrcp.pop %v874
    %v877 = vmul.f32 1.0, %v876
    %v878 = vrcp.pop %v875
    %v879 = vmul.f32 1.0, %v878
    %v880 = vmul.f32 %v879, %v227
    %v881 = vadd.f32 %v880, %v228
    %v882 = vmul.f32 %v877, %v881
    %v883 = vmul.f32 %v877, %v816
    %884 = vrot.lane.b32.xlu0 %v883, 64
    %v885 = vpop.permute.xlu0 %884
    %v886 = vadd.f32 %v882, %v885
    %887 = vrot.lane.b32.xlu0 %v886, 64
    %v888 = vpop.permute.xlu0 %887
    %v889 = vsel %vm226, %v886, %v888
    %v890 = vtanh.pop %v889
    %v891 = vmul.f32 %v881, %v890
    %v892 = vld [vmem:[#allocation6] sm:$0xff]
    %v893 = vld [vmem:[#allocation6 + $0x8] sm:$0xff]
    %v894 = vld [vmem:[#allocation6 + $0x10] sm:$0xff]
    %v895 = vld [vmem:[#allocation6 + $0x18] sm:$0xff]
    %v896 = vld [vmem:[#allocation6 + $0x20] sm:$0xff]
    %v897 = vld [vmem:[#allocation6 + $0x28] sm:$0xff]
    %v898 = vld [vmem:[#allocation6 + $0x30] sm:$0xff]
    %v899 = vld [vmem:[#allocation6 + $0x38] sm:$0xff]
    %v900 = vld [vmem:[#allocation6 + $0x40] sm:$0xff]
    %v901 = vld [vmem:[#allocation6 + $0x48] sm:$0xff]
    %v902 = vld [vmem:[#allocation6 + $0x50] sm:$0xff]
    %v903 = vld [vmem:[#allocation6 + $0x58] sm:$0xff]
    %v904 = vld [vmem:[#allocation6 + $0x60] sm:$0xff]
    %v905 = vld [vmem:[#allocation6 + $0x68] sm:$0xff]
    %v906 = vld [vmem:[#allocation6 + $0x70] sm:$0xff]
    %v907 = vld [vmem:[#allocation6 + $0x78] sm:$0xff]
    %v908 = vld [vmem:[%s5] sm:$0x1]
    %v910 = vlaneseq
    %v911 = vshrl.u32 %v910, 7
    %v912 = vsub.s32 0, %v911
    %v913 = vrot.slane %v908, %v912
    %915 = vmatprep.subr.mxu0 0.0
    %916 = vmatpush1.msra.mxu0 %v892
    %917 = vmatprep.subr.mxu0 0.0
    %918 = vmatpush1.msra.mxu0 %v893
    %919 = vmatprep.subr.mxu0 0.0
    %920 = vmatpush1.msra.mxu0 %v894
    %921 = vmatprep.subr.mxu0 0.0
    %922 = vmatpush1.msra.mxu0 %v895
    %923 = vmatprep.subr.mxu0 0.0
    %924 = vmatpush1.msra.mxu0 %v896
    %925 = vmatprep.subr.mxu0 0.0
    %926 = vmatpush1.msra.mxu0 %v897
    %927 = vmatprep.subr.mxu0 0.0
    %928 = vmatpush1.msra.mxu0 %v898
    %929 = vmatprep.subr.mxu0 0.0
    %930 = vmatpush1.msra.mxu0 %v899
    %931 = vmatprep.subr.mxu0 0.0
    %932 = vmatpush1.msra.mxu0 %v900
    %933 = vmatprep.subr.mxu0 0.0
    %934 = vmatpush1.msra.mxu0 %v901
    %935 = vmatprep.subr.mxu0 0.0
    %936 = vmatpush1.msra.mxu0 %v902
    %937 = vmatprep.subr.mxu0 0.0
    %938 = vmatpush1.msra.mxu0 %v903
    %939 = vmatprep.subr.mxu0 0.0
    %940 = vmatpush1.msra.mxu0 %v904
    %941 = vmatprep.subr.mxu0 0.0
    %942 = vmatpush1.msra.mxu0 %v905
    %943 = vmatprep.subr.mxu0 0.0
    %944 = vmatpush1.msra.mxu0 %v906
    %945 = vmatprep.subr.mxu0 0.0
    %946 = vmatpush1.msra.mxu0 %v907
    %947 = vmatprep.subr.mxu0 0.0
    %948 = vmatpush1.msra.mxu0 0.0
    %949 = vmatprep.subr.mxu0 0.0
    %950 = vmatpush1.msra.mxu0 0.0
    %951 = vmatprep.subr.mxu0 0.0
    %952 = vmatpush1.msra.mxu0 0.0
    %953 = vmatprep.subr.mxu0 0.0
    %954 = vmatpush1.msra.mxu0 0.0
    %955 = vmatprep.subr.mxu0 0.0
    %956 = vmatpush1.msra.mxu0 0.0
    %957 = vmatprep.subr.mxu0 0.0
    %958 = vmatpush1.msra.mxu0 0.0
    %959 = vmatprep.subr.mxu0 0.0
    %960 = vmatpush1.msra.mxu0 0.0
    %961 = vmatprep.subr.mxu0 0.0
    %962 = vmatpush1.msra.mxu0 0.0
    %963 = vmatprep.subr.mxu0 0.0
    %964 = vmatpush1.msra.mxu0 0.0
    %965 = vmatprep.subr.mxu0 0.0
    %966 = vmatpush1.msra.mxu0 0.0
    %967 = vmatprep.subr.mxu0 0.0
    %968 = vmatpush1.msra.mxu0 0.0
    %969 = vmatprep.subr.mxu0 0.0
    %970 = vmatpush1.msra.mxu0 0.0
    %971 = vmatprep.subr.mxu0 0.0
    %972 = vmatpush1.msra.mxu0 0.0
    %973 = vmatprep.subr.mxu0 0.0
    %974 = vmatpush1.msra.mxu0 0.0
    %975 = vmatprep.subr.mxu0 0.0
    %976 = vmatpush1.msra.mxu0 0.0
    %977 = vmatprep.subr.mxu0 0.0
    %978 = vmatpush1.msra.mxu0 0.0
    %979 = vmatprep.mubr.f32.mxu0 0.0
    %980 = vmatmul.mubr.f32.gmra.mrb[0].mxu0 %v891
    %v981 = vpop.f32.mrb[0].mxu0
    %v982 = vadd.f32 %v913, %v981
    %v983 = vpop.f32.mrb[0].mxu0
    %984 = vdwg.mxu0
    %985 = vst [vmem:[#allocation8] sm:$0xff] %v982
    // Predicated region
    $region34: #{tpu_custom_call.1} parent=1 // pred_check
      _
    $region35: #{tpu_custom_call.1} parent=1 // pred_check_branch
      %987 = sbr.rel (0) target = $region37
    $region36: #{tpu_custom_call.1} parent=1 // pred_region
      %s989 = ssub.s32 128, 128
      %990 = vsyncadd [#allocation5], %s989
      %s992 = sshll.u32 [#allocation8], 4
      %s993 = int_to_ptr.vmem [resolvable:$true] %s992
      %995 = dma.vmem_to_hbm [thread:$0]  %s993, 128, %s6, [#allocation5]
    $region37: #{tpu_custom_call.1} parent=1 // pred_fallthru
      _
    // Predicated region
    $region38: #{tpu_custom_call.1} parent=1 // pred_check
      _
    $region39: #{tpu_custom_call.1} parent=1 // pred_check_branch
      %997 = sbr.rel (0) target = $region41
    $region40: #{tpu_custom_call.1} parent=1 // pred_region
      %998 = dma.done [#allocation5], 128
    $region41: #{tpu_custom_call.1} parent=1 // pred_fallthru
      _
    %999 = vsyncpa [#allocation4], 1
    %1000 = vsyncpa [#allocation7], 1
    %1001 = vsyncpa [#allocation5], 1

</llo_original>
